<compile_context>
chip_gen: v7x
topology: tpu7x:2x2x1
jax: 0.10.0
libtpu: 0.0.40
codegen_flags: <defaults>
</compile_context>

<pallas_src>
import functools

import jax
import jax.numpy as jnp
from jax.experimental import pallas as pl
from jax.experimental.pallas import tpu as pltpu


def _round_up(a, b):
    return (a + b - 1) // b * b


def _plan_tiles(K, N):
    """Shared K/N tiling plan. Used both at parameter-creation time (weight
    pre-padding) and in the forward wrapper so the two always agree."""
    # --- N: lane-dense output, tn in {512, 256, 128} ---
    if N <= 128:
        Np, tn = 128, 128
    else:
        Np = _round_up(N, 256)
        tn = 512 if Np % 512 == 0 else 256
    # --- K: single block when it fits, otherwise stream with a big tk ---
    if K <= 1024:
        Kp, tk = K, K
    else:
        tk = 1024 if K % 1024 == 0 else 512
        Kp = _round_up(K, tk)
    return Kp, Np, tk, tn


# ----------------------------- Pallas kernels ------------------------------ #
# Single-K-block kernels: no scratch, no zero-init, direct store.
def _linear_bias_direct_kernel(x_ref, wt_ref, b_ref, o_ref):
    o_ref[...] = (jnp.dot(x_ref[...], wt_ref[...],
                          preferred_element_type=jnp.float32)
                  + b_ref[...]).astype(o_ref.dtype)


def _linear_nobias_direct_kernel(x_ref, wt_ref, o_ref):
    o_ref[...] = jnp.dot(x_ref[...], wt_ref[...],
                         preferred_element_type=jnp.float32).astype(o_ref.dtype)


# K-streamed kernels: f32 accumulator resident across the (last) K grid axis.
def _linear_bias_kernel(x_ref, wt_ref, b_ref, o_ref, acc_ref):
    k = pl.program_id(2)

    @pl.when(k == 0)
    def _():
        acc_ref[...] = jnp.zeros_like(acc_ref)

    acc_ref[...] += jnp.dot(x_ref[...], wt_ref[...],
                            preferred_element_type=jnp.float32)

    @pl.when(k == pl.num_programs(2) - 1)
    def _():
        o_ref[...] = (acc_ref[...] + b_ref[...]).astype(o_ref.dtype)


def _linear_nobias_kernel(x_ref, wt_ref, o_ref, acc_ref):
    k = pl.program_id(2)

    @pl.when(k == 0)
    def _():
        acc_ref[...] = jnp.zeros_like(acc_ref)

    acc_ref[...] += jnp.dot(x_ref[...], wt_ref[...],
                            preferred_element_type=jnp.float32)

    @pl.when(k == pl.num_programs(2) - 1)
    def _():
        o_ref[...] = acc_ref[...].astype(o_ref.dtype)


# ------------------------------- wrapper ----------------------------------- #
@functools.partial(jax.jit, static_argnames=("out_features",))
def linear_forward(x, wt, bias=None, out_features=None):
    """y = x @ W.T (+ bias).

    `wt` is the weight stored pre-transposed (in_features, out_features) and
    (on the hot path) pre-padded to (Kp, Np) in the compute dtype by
    `make_linear_params`; numerically identical to the PyTorch module's
    `x @ weight.T + bias`.  `bias` is kept f32 and added to the f32
    accumulator inside the kernel.
    """
    K = x.shape[-1]
    if out_features is None:
        out_features = int(bias.shape[0]) if bias is not None else int(wt.shape[1])
    N = out_features

    Kp, Np, tk, tn = _plan_tiles(K, N)

    # Main path: wt already (Kp, Np) in x.dtype (done once at init).
    # Fallback (documented, matches PyTorch `weight.to(x.dtype)`): cast/pad.
    if wt.dtype != x.dtype:
        wt = wt.astype(x.dtype)
    if wt.shape != (Kp, Np):
        wt = jnp.pad(wt, ((0, Kp - wt.shape[0]), (0, Np - wt.shape[1])))

    orig_shape = x.shape
    x2d = x.reshape(-1, K)
    M = x2d.shape[0]
    if Kp != K:
        # Zero-padding along K is matmul-safe; only hit on the K-streamed path.
        x2d = jnp.pad(x2d, ((0, 0), (0, Kp - K)))

    # --- M tiling: balanced tiles (<=512 rows) minimise ragged-M padding ---
    if M <= 512:
        tm = M
    else:
        n_m = -(-M // 512)
        tm = _round_up(-(-M // n_m), 8)
    gm = -(-M // tm)
    gn = Np // tn
    gk = Kp // tk

    # v7x has 2 TensorCores: ensure >=2 parallel tiles when possible.
    if gm == 1 and gn == 1 and tn > 128:
        tn //= 2
        gn = Np // tn

    out_dtype = x.dtype
    itemsize = jnp.dtype(out_dtype).itemsize
    cost = pl.CostEstimate(
        flops=2 * M * Kp * Np,
        bytes_accessed=(M * Kp + Kp * Np + M * Np) * itemsize,
        transcendentals=0,
    )
    cparams = pltpu.CompilerParams(
        dimension_semantics=(("parallel", "parallel") if gk == 1
                             else ("parallel", "parallel", "arbitrary")),
        # Explicit budget: worst-case f32 tiles double-buffered are ~11-13 MiB,
        # above v5e's 16 MiB scoped default; 48 MiB is safe on all generations
        # (v5e/v6e: 128 MiB physical, v7x: 64 MiB physical).
        vmem_limit_bytes=48 * 1024 * 1024,
    )

    if bias is not None:
        b2d = bias.astype(jnp.float32).reshape(1, N)
        if Np != N:
            b2d = jnp.pad(b2d, ((0, 0), (0, Np - N)))

    if gk == 1:
        # -------- direct path: single K block, no accumulator scratch -------
        x_spec = pl.BlockSpec((tm, tk), lambda i, j: (i, 0))
        w_spec = pl.BlockSpec((tk, tn), lambda i, j: (0, j))
        o_spec = pl.BlockSpec((tm, tn), lambda i, j: (i, j))
        if bias is not None:
            b_spec = pl.BlockSpec((1, tn), lambda i, j: (0, j))
            out2d = pl.pallas_call(
                _linear_bias_direct_kernel,
                out_shape=jax.ShapeDtypeStruct((M, Np), out_dtype),
                grid_spec=pltpu.PrefetchScalarGridSpec(
                    num_scalar_prefetch=0, grid=(gm, gn),
                    in_specs=[x_spec, w_spec, b_spec], out_specs=o_spec),
                compiler_params=cparams, cost_estimate=cost,
            )(x2d, wt, b2d)
        else:
            out2d = pl.pallas_call(
                _linear_nobias_direct_kernel,
                out_shape=jax.ShapeDtypeStruct((M, Np), out_dtype),
                grid_spec=pltpu.PrefetchScalarGridSpec(
                    num_scalar_prefetch=0, grid=(gm, gn),
                    in_specs=[x_spec, w_spec], out_specs=o_spec),
                compiler_params=cparams, cost_estimate=cost,
            )(x2d, wt)
    else:
        # -------- K-streamed path: f32 accumulator, reduction axis last -----
        x_spec = pl.BlockSpec((tm, tk), lambda i, j, k: (i, k))
        w_spec = pl.BlockSpec((tk, tn), lambda i, j, k: (k, j))
        o_spec = pl.BlockSpec((tm, tn), lambda i, j, k: (i, j))
        scratch = [pltpu.VMEM((tm, tn), jnp.float32)]
        if bias is not None:
            b_spec = pl.BlockSpec((1, tn), lambda i, j, k: (0, j))
            out2d = pl.pallas_call(
                _linear_bias_kernel,
                out_shape=jax.ShapeDtypeStruct((M, Np), out_dtype),
                grid_spec=pltpu.PrefetchScalarGridSpec(
                    num_scalar_prefetch=0, grid=(gm, gn, gk),
                    in_specs=[x_spec, w_spec, b_spec], out_specs=o_spec,
                    scratch_shapes=scratch),
                compiler_params=cparams, cost_estimate=cost,
            )(x2d, wt, b2d)
        else:
            out2d = pl.pallas_call(
                _linear_nobias_kernel,
                out_shape=jax.ShapeDtypeStruct((M, Np), out_dtype),
                grid_spec=pltpu.PrefetchScalarGridSpec(
                    num_scalar_prefetch=0, grid=(gm, gn, gk),
                    in_specs=[x_spec, w_spec], out_specs=o_spec,
                    scratch_shapes=scratch),
                compiler_params=cparams, cost_estimate=cost,
            )(x2d, wt)

    if Np != N:
        out2d = out2d[:, :N]
    return out2d.reshape(*orig_shape[:-1], N)


# -------------------------- parameter construction ------------------------- #
def make_linear_params(key, in_features, out_features, bias=True,
                       init_mode='kaiming_normal', init_weight=1.0,
                       init_bias=0.0, dtype=jnp.float32):
    """Matches the PyTorch module's init. The weight is transposed ONCE to
    (in_features, out_features), cast to the compute dtype, and zero-padded
    to the (Kp, Np) layout the kernel tiles over -> the forward never
    re-materializes the weight in HBM."""
    kw, kb = jax.random.split(key)
    fan_in, fan_out = in_features, out_features

    def _init(k, shape):
        if init_mode == 'kaiming_normal':
            return jnp.sqrt(1.0 / fan_in) * jax.random.normal(k, shape, jnp.float32)
        if init_mode == 'kaiming_uniform':
            return jnp.sqrt(3.0 / fan_in) * (
                jax.random.uniform(k, shape, jnp.float32) * 2 - 1)
        if init_mode == 'xavier_normal':
            return jnp.sqrt(2.0 / (fan_in + fan_out)) * jax.random.normal(
                k, shape, jnp.float32)
        if init_mode == 'xavier_uniform':
            return jnp.sqrt(6.0 / (fan_in + fan_out)) * (
                jax.random.uniform(k, shape, jnp.float32) * 2 - 1)
        raise ValueError(f'Invalid init mode "{init_mode}"')

    weight = _init(kw, (out_features, in_features)) * init_weight   # (N, K)
    wt = weight.T.astype(dtype)                                     # (K, N)
    Kp, Np, _, _ = _plan_tiles(in_features, out_features)
    if (Kp, Np) != wt.shape:
        wt = jnp.pad(wt, ((0, Kp - in_features), (0, Np - out_features)))
    b = (_init(kb, (out_features,)) * init_bias).astype(jnp.float32) \
        if bias else None
    return wt, b


# --------------------------------- main ------------------------------------ #
if __name__ == "__main__":
    key = jax.random.PRNGKey(0)
    k_x, k_p, k_x2, k_x3, k_p2 = jax.random.split(key, 5)

    hi = jax.lax.Precision.HIGHEST

    # --- test 1: module-like shapes, direct single-K-block path, N<128 pad ---
    in_features, out_features = 32, 64
    x = jax.random.normal(k_x, (2, 4, in_features), jnp.float32)
    wt, bias = make_linear_params(k_p, in_features, out_features, bias=True)
    y = linear_forward(x, wt, bias, out_features=out_features)
    jax.block_until_ready(y)
    y_ref = (jnp.dot(x.reshape(-1, in_features),
                     wt[:in_features, :out_features], precision=hi)
             + bias).reshape(2, 4, out_features)
    assert y.shape == (2, 4, out_features)
    assert jnp.allclose(y, y_ref, atol=1e-3, rtol=1e-3)

    # --- test 2: ragged M (balanced tm, partial last M block) ---
    x2 = jax.random.normal(k_x2, (520, in_features), jnp.float32)
    y2 = linear_forward(x2, wt, bias, out_features=out_features)
    jax.block_until_ready(y2)
    y2_ref = jnp.dot(x2, wt[:in_features, :out_features], precision=hi) + bias
    assert jnp.allclose(y2, y2_ref, atol=1e-3, rtol=1e-3)

    # --- test 3: K-streamed path (K > 1024, padded to multiple of tk), no bias
    Kbig, Nbig = 1280, 128
    x3 = jax.random.normal(k_x3, (16, Kbig), jnp.float32)
    wt3, _ = make_linear_params(k_p2, Kbig, Nbig, bias=False)
    y3 = linear_forward(x3, wt3, None, out_features=Nbig)
    jax.block_until_ready(y3)
    y3_ref = jnp.dot(x3, wt3[:Kbig, :Nbig], precision=hi)
    assert jnp.allclose(y3, y3_ref, atol=2e-3, rtol=2e-3)

    print("KERNEL_OK")
</pallas_src>

<mosaic_0001>
module attributes {stable_mosaic.version = 11 : i64} {
  func.func @_linear_bias_direct_kernel(%arg0: i32, %arg1: i32, %arg2: memref<8x32xf32, #tpu.memory_space<vmem>>, %arg3: memref<32x128xf32, #tpu.memory_space<vmem>>, %arg4: memref<1x128xf32, #tpu.memory_space<vmem>>, %arg5: memref<8x128xf32, #tpu.memory_space<vmem>>) attributes {dimension_semantics = [#tpu.dimension_semantics<parallel>, #tpu.dimension_semantics<parallel>], iteration_bounds = array<i64: 1, 1>, scalar_prefetch = 0 : i64, scratch_operands = 0 : i64, tpu.core_type = #tpu.core_type<tc>, window_params = [{transform_indices = @transform_0, window_bounds = array<i64: 8, 32>}, {transform_indices = @transform_1, window_bounds = array<i64: 32, 128>}, {transform_indices = @transform_2, window_bounds = array<i64: 1, 128>}, {transform_indices = @transform_3, window_bounds = array<i64: 8, 128>}]} {
    %c0 = arith.constant 0 : index
    %c0_0 = arith.constant 0 : index
    %0 = vector.load %arg2[%c0, %c0_0] : memref<8x32xf32, #tpu.memory_space<vmem>>, vector<8x32xf32>
    %c0_1 = arith.constant 0 : index
    %c0_2 = arith.constant 0 : index
    %1 = vector.load %arg3[%c0_1, %c0_2] : memref<32x128xf32, #tpu.memory_space<vmem>>, vector<32x128xf32>
    %cst = arith.constant dense<0.000000e+00> : vector<8x128xf32>
    %2 = tpu.matmul %0, %1, %cst {dimension_numbers = #tpu.dot_dimension_numbers<[1], [0], [0], [1], [0, 0, 1, 1], [], []>} : vector<8x32xf32>, vector<32x128xf32>, vector<8x128xf32> -> vector<8x128xf32>
    %c0_3 = arith.constant 0 : index
    %c0_4 = arith.constant 0 : index
    %3 = vector.load %arg4[%c0_3, %c0_4] : memref<1x128xf32, #tpu.memory_space<vmem>>, vector<1x128xf32>
    %4 = vector.broadcast %3 : vector<1x128xf32> to vector<8x128xf32>
    %5 = arith.addf %2, %4 : vector<8x128xf32>
    %c0_5 = arith.constant 0 : index
    %c0_6 = arith.constant 0 : index
    %6 = vector.load %arg5[%c0_5, %c0_6] : memref<8x128xf32, #tpu.memory_space<vmem>>, vector<8x128xf32>
    tpu.vector_store %arg5[%c0_5, %c0_6], %5 {strides = array<i32>} : memref<8x128xf32, #tpu.memory_space<vmem>>, vector<8x128xf32>,
    return
  }
  func.func @transform_0(%arg0: i32, %arg1: i32) -> (i32, i32) {
    %c0_i32 = arith.constant 0 : i32
    %c0_i32_0 = arith.constant 0 : i32
    return %arg0, %c0_i32 : i32, i32
  }
  func.func @transform_1(%arg0: i32, %arg1: i32) -> (i32, i32) {
    %c0_i32 = arith.constant 0 : i32
    %c0_i32_0 = arith.constant 0 : i32
    return %c0_i32, %arg1 : i32, i32
  }
  func.func @transform_2(%arg0: i32, %arg1: i32) -> (i32, i32) {
    %c0_i32 = arith.constant 0 : i32
    %c0_i32_0 = arith.constant 0 : i32
    return %c0_i32, %arg1 : i32, i32
  }
  func.func @transform_3(%arg0: i32, %arg1: i32) -> (i32, i32) {
    %c0_i32 = arith.constant 0 : i32
    return %arg0, %arg1 : i32, i32
  }
}

</mosaic_0001>

<llo_original>
// kernel: linear_forward.1
$region0: #{linear_forward.1}
  #allocation0 [shape = 'u32[]', space=smem, size = 0x4, offset = 0x4, fixed_abs, tag = 'smem constant byte address 0x4 - core index']
  #allocation1 [shape = 'u32[144,128]{1,0:T(1,128)}', space=vmem, size = 0x12000, scoped, tag = 'internal scratch']
  %s0 = inlined_call_operand.vmem [shape: f32[8,32], index: 0, kind: input, shape index: {}]
  %s1 = inlined_call_operand.hbm [shape: f32[32,128], index: 1, kind: input, shape index: {}]
  %s2 = inlined_call_operand.vmem [shape: f32[1,128], index: 2, kind: input, shape index: {}]
  %s3 = inlined_call_operand.hbm [shape: f32[8,128], index: 3, kind: output, shape index: {}]
  %s4 = sld [smem:[#allocation0]]
  $region26: #{linear_forward.1} parent=0
    _
  %s6 = ssub.s32 1, %s4
  %s7 = scalar_select 0, %s6, %s4
  $region1: #{linear_forward.1} parent=0
    #allocation2 [shape = 'u8[16384]{0}', space=vmem, size = 0x4000, scoped, tag = 'input window, operand 1, single buffered']
    #allocation3 [shape = 's32[1]{0}', space=sflag, size = 0x4, scoped, tag = 'scoped memory for linear_forward.1']
    #allocation4 [shape = 's32[1]{0}', space=sflag, size = 0x4, scoped, tag = 'scoped memory for linear_forward.1']
    #allocation5 [shape = 'u8[4096]{0}', space=vmem, size = 0x1000, scoped, tag = 'output window, operand 0, single buffered']
    %8 = vsyncpa [#allocation3], 0
    %9 = vsyncpa [#allocation4], 0
    // Predicated region
    $region2: #{linear_forward.1} parent=1 // pred_check
      _
    $region3: #{linear_forward.1} parent=1 // pred_check_branch
      %11 = sbr.rel (0) target = $region5
    $region4: #{linear_forward.1} parent=1 // pred_region
      _
    $region5: #{linear_forward.1} parent=1 // pred_fallthru
      _
    // Predicated region
    $region6: #{linear_forward.1} parent=1 // pred_check
      _
    $region7: #{linear_forward.1} parent=1 // pred_check_branch
      %13 = sbr.rel (0) target = $region9
    $region8: #{linear_forward.1} parent=1 // pred_region
      %s15 = ssub.s32 512, 512
      %16 = vsyncadd [#allocation3], %s15
      %s17 = sshll.u32 [#allocation2], 4
      %s18 = int_to_ptr.vmem [resolvable:$true] %s17
      %23 = dma.hbm_to_vmem [thread:$0]  %s1, 512, %s18, [#allocation3], 128, 128, 8
    $region9: #{linear_forward.1} parent=1 // pred_fallthru
      _
    // Predicated region
    $region10: #{linear_forward.1} parent=1 // pred_check
      _
    $region11: #{linear_forward.1} parent=1 // pred_check_branch
      %25 = sbr.rel (0) target = $region13
    $region12: #{linear_forward.1} parent=1 // pred_region
      _
    $region13: #{linear_forward.1} parent=1 // pred_fallthru
      _
    // Predicated region
    $region14: #{linear_forward.1} parent=1 // pred_check
      _
    $region15: #{linear_forward.1} parent=1 // pred_check_branch
      %27 = sbr.rel (0) target = $region17
    $region16: #{linear_forward.1} parent=1 // pred_region
      %28 = dma.done [#allocation3], 512
    $region17: #{linear_forward.1} parent=1 // pred_fallthru
      _
    %v29 = vld [vmem:[%s0] sm:$0xff]
    %v30 = vld [vmem:[#allocation2] sm:$0xff]
    %v31 = vld [vmem:[#allocation2 + $0x8] sm:$0xff]
    %v32 = vld [vmem:[#allocation2 + $0x10] sm:$0xff]
    %v33 = vld [vmem:[#allocation2 + $0x18] sm:$0xff]
    %v34 = vld [vmem:[%s2] sm:$0x1]
    %v36 = vlaneseq
    %v37 = vshrl.u32 %v36, 7
    %v38 = vsub.s32 0, %v37
    %v39 = vrot.slane %v34, %v38
    %vm41 = vcmask 261120
    %v43 = vsel %vm41, %v29, 0
    %45 = vmatprep.subr.mxu0 0.0
    %46 = vmatpush1.msra.mxu0 %v30
    %47 = vmatprep.subr.mxu0 0.0
    %48 = vmatpush1.msra.mxu0 %v31
    %49 = vmatprep.subr.mxu0 0.0
    %50 = vmatpush1.msra.mxu0 %v32
    %51 = vmatprep.subr.mxu0 0.0
    %52 = vmatpush1.msra.mxu0 %v33
    %53 = vmatprep.subr.mxu0 0.0
    %54 = vmatpush1.msra.mxu0 0.0
    %55 = vmatprep.subr.mxu0 0.0
    %56 = vmatpush1.msra.mxu0 0.0
    %57 = vmatprep.subr.mxu0 0.0
    %58 = vmatpush1.msra.mxu0 0.0
    %59 = vmatprep.subr.mxu0 0.0
    %60 = vmatpush1.msra.mxu0 0.0
    %61 = vmatprep.subr.mxu0 0.0
    %62 = vmatpush1.msra.mxu0 0.0
    %63 = vmatprep.subr.mxu0 0.0
    %64 = vmatpush1.msra.mxu0 0.0
    %65 = vmatprep.subr.mxu0 0.0
    %66 = vmatpush1.msra.mxu0 0.0
    %67 = vmatprep.subr.mxu0 0.0
    %68 = vmatpush1.msra.mxu0 0.0
    %69 = vmatprep.subr.mxu0 0.0
    %70 = vmatpush1.msra.mxu0 0.0
    %71 = vmatprep.subr.mxu0 0.0
    %72 = vmatpush1.msra.mxu0 0.0
    %73 = vmatprep.subr.mxu0 0.0
    %74 = vmatpush1.msra.mxu0 0.0
    %75 = vmatprep.subr.mxu0 0.0
    %76 = vmatpush1.msra.mxu0 0.0
    %77 = vmatprep.subr.mxu0 0.0
    %78 = vmatpush1.msra.mxu0 0.0
    %79 = vmatprep.subr.mxu0 0.0
    %80 = vmatpush1.msra.mxu0 0.0
    %81 = vmatprep.subr.mxu0 0.0
    %82 = vmatpush1.msra.mxu0 0.0
    %83 = vmatprep.subr.mxu0 0.0
    %84 = vmatpush1.msra.mxu0 0.0
    %85 = vmatprep.subr.mxu0 0.0
    %86 = vmatpush1.msra.mxu0 0.0
    %87 = vmatprep.subr.mxu0 0.0
    %88 = vmatpush1.msra.mxu0 0.0
    %89 = vmatprep.subr.mxu0 0.0
    %90 = vmatpush1.msra.mxu0 0.0
    %91 = vmatprep.subr.mxu0 0.0
    %92 = vmatpush1.msra.mxu0 0.0
    %93 = vmatprep.subr.mxu0 0.0
    %94 = vmatpush1.msra.mxu0 0.0
    %95 = vmatprep.subr.mxu0 0.0
    %96 = vmatpush1.msra.mxu0 0.0
    %97 = vmatprep.subr.mxu0 0.0
    %98 = vmatpush1.msra.mxu0 0.0
    %99 = vmatprep.subr.mxu0 0.0
    %100 = vmatpush1.msra.mxu0 0.0
    %101 = vmatprep.subr.mxu0 0.0
    %102 = vmatpush1.msra.mxu0 0.0
    %103 = vmatprep.subr.mxu0 0.0
    %104 = vmatpush1.msra.mxu0 0.0
    %105 = vmatprep.subr.mxu0 0.0
    %106 = vmatpush1.msra.mxu0 0.0
    %107 = vmatprep.subr.mxu0 0.0
    %108 = vmatpush1.msra.mxu0 0.0
    %109 = vmatprep.mubr.f32.mxu0 0.0
    %110 = vmatmul.mubr.f32.gmra.mrb[0].mxu0 %v43
    %v111 = vpop.f32.mrb[0].mxu0
    %v112 = vadd.f32 %v39, %v111
    %v113 = vpop.f32.mrb[0].mxu0
    %114 = vdwg.mxu0
    %115 = vst [vmem:[#allocation5] sm:$0xff] %v112
    // Predicated region
    $region18: #{linear_forward.1} parent=1 // pred_check
      _
    $region19: #{linear_forward.1} parent=1 // pred_check_branch
      %117 = sbr.rel (0) target = $region21
    $region20: #{linear_forward.1} parent=1 // pred_region
      %s119 = ssub.s32 128, 128
      %120 = vsyncadd [#allocation4], %s119
      %s122 = sshll.u32 [#allocation5], 4
      %s123 = int_to_ptr.vmem [resolvable:$true] %s122
      %125 = dma.vmem_to_hbm [thread:$0]  %s123, 128, %s3, [#allocation4]
    $region21: #{linear_forward.1} parent=1 // pred_fallthru
      _
    // Predicated region
    $region22: #{linear_forward.1} parent=1 // pred_check
      _
    $region23: #{linear_forward.1} parent=1 // pred_check_branch
      %127 = sbr.rel (0) target = $region25
    $region24: #{linear_forward.1} parent=1 // pred_region
      %128 = dma.done [#allocation4], 128
    $region25: #{linear_forward.1} parent=1 // pred_fallthru
      _
    %129 = vsyncpa [#allocation3], 1
    %130 = vsyncpa [#allocation4], 1

</llo_original>
